<compile_context>
chip_gen: v5e
topology: v5e:2x2
jax: 0.10.0
libtpu: 0.0.40
codegen_flags: <defaults>
</compile_context>

<pallas_src>
import math

import jax
import jax.numpy as jnp
from jax.experimental import pallas as pl
from jax.experimental.pallas import tpu as pltpu

_MiB = 1024 * 1024
_ROW_TILES = (4096, 2048, 1024, 512, 256, 128, 64, 32, 16, 8, 4, 2, 1)


def _device_budget():
    """(single-buffer block budget, VMEM-limit cap) tuned per TPU generation."""
    kind = ""
    try:
        kind = jax.devices()[0].device_kind.lower()
    except Exception:
        pass
    if "v6" in kind:
        return 14 * _MiB, 96 * _MiB       # 128 MiB physical VMEM
    if "v5" in kind:
        return 12 * _MiB, 96 * _MiB       # 128 MiB physical, 16 MiB default scoped
    # v7x (64 MiB VMEM per TensorCore) or unknown: stay conservative.
    return 12 * _MiB, 48 * _MiB


def _largest_tile(candidates, cap):
    for t in candidates:
        if t <= cap:
            return t
    return candidates[-1]


def _round_down_128(x):
    return max(128, (x // 128) * 128)


def _row_concat_kernel(widths):
    """2-D plan: each input block lands in its static column slice."""
    offsets, off = [], 0
    for w in widths:
        offsets.append(off)
        off += w

    def kernel(*refs):
        out_ref = refs[-1]
        for x_ref, o, w in zip(refs[:-1], offsets, widths):
            out_ref[:, o:o + w] = x_ref[...].astype(out_ref.dtype)

    return kernel


def _col_concat_kernel(channels):
    """3-D plan: (rows, C_i, inner-tile) block into static channel slice."""
    offsets, off = [], 0
    for c in channels:
        offsets.append(off)
        off += c

    def kernel(*refs):
        out_ref = refs[-1]
        for x_ref, o, c in zip(refs[:-1], offsets, channels):
            out_ref[:, o:o + c, :] = x_ref[...].astype(out_ref.dtype)

    return kernel


def concat_forward(xs, dimension=1):
    """Pallas TPU equivalent of torch.cat(xs, dim=dimension)."""
    xs = list(xs)
    assert len(xs) >= 1
    if len(xs) == 1:
        return xs[0]

    rank = xs[0].ndim
    d = dimension % rank
    out_dtype = jnp.result_type(*[x.dtype for x in xs])
    out_isz = jnp.dtype(out_dtype).itemsize
    in_isz = [jnp.dtype(x.dtype).itemsize for x in xs]

    shape0 = xs[0].shape
    outer = math.prod(shape0[:d]) if d > 0 else 1
    inner = math.prod(shape0[d + 1:]) if d + 1 < rank else 1

    channels = [int(x.shape[d]) for x in xs]
    c_total = sum(channels)
    widths = [c * inner for c in channels]
    total_width = c_total * inner

    budget, vmem_cap = _device_budget()

    # Bytes moved per flattened output row (all inputs read + output written).
    row_bytes = sum(w * s for w, s in zip(widths, in_isz)) + total_width * out_isz
    # Bytes per (row, inner-element) cell, used by the column-tiled plan.
    cell_bytes = sum(c * s for c, s in zip(channels, in_isz)) + c_total * out_isz

    cost = pl.CostEstimate(flops=0, transcendentals=0,
                           bytes_accessed=outer * row_bytes)

    # ---- plan selection --------------------------------------------------
    max_rows = budget // row_bytes          # rows per step within the budget
    use_cols = False
    tb = 1
    if max_rows >= 1:
        tb = _largest_tile(_ROW_TILES, min(outer, max_rows))
        if pl.cdiv(outer, tb) < 4 and inner >= 256:
            # Short row grid: tile the inner dim too so the DMA pipeline (and
            # v7x's second TensorCore) has work.
            use_cols = True
    else:
        if inner >= 256:
            use_cols = True                  # even one row blows the budget
        else:
            # TODO(synk): pathological case (huge concat-dim extent, tiny inner)
            # falls back to 1-row blocks and a raised VMEM limit.
            tb = 1

    if use_cols:
        # Column-tiled plan over (outer, C_i, inner) slabs.
        if outer <= 8:
            tb = outer
        else:
            tb = _largest_tile(_ROW_TILES,
                               min(outer, max(1, budget // (128 * cell_bytes))))
        tc_budget = max(128, budget // max(1, tb * cell_bytes))
        tc_parallel = _round_down_128((inner + 1) // 2)   # keep >= 2 inner steps
        tc = _round_down_128(min(tc_budget, tc_parallel, inner))

        flats = [x.reshape(outer, c, inner) for x, c in zip(xs, channels)]
        grid = (pl.cdiv(outer, tb), pl.cdiv(inner, tc))
        in_specs = [pl.BlockSpec((tb, c, tc), lambda r, cc: (r, 0, cc))
                    for c in channels]
        out_spec = pl.BlockSpec((tb, c_total, tc), lambda r, cc: (r, 0, cc))
        out_flat_shape = jax.ShapeDtypeStruct((outer, c_total, inner), out_dtype)
        kernel = _col_concat_kernel(channels)
        semantics = ("parallel", "parallel")
        step_bytes = tb * tc * cell_bytes
    else:
        flats = [x.reshape(outer, w) for x, w in zip(xs, widths)]
        grid = (pl.cdiv(outer, tb),)
        in_specs = [pl.BlockSpec((tb, w), lambda r: (r, 0)) for w in widths]
        out_spec = pl.BlockSpec((tb, total_width), lambda r: (r, 0))
        out_flat_shape = jax.ShapeDtypeStruct((outer, total_width), out_dtype)
        kernel = _row_concat_kernel(widths)
        semantics = ("parallel",)
        step_bytes = tb * row_bytes

    # Cover double-buffered blocks + headroom, capped per generation.
    vmem_limit = int(min(vmem_cap, max(2 * step_bytes + 4 * _MiB, 16 * _MiB)))

    out_flat = pl.pallas_call(
        kernel,
        out_shape=out_flat_shape,
        grid=grid,
        in_specs=in_specs,
        out_specs=out_spec,
        compiler_params=pltpu.CompilerParams(
            dimension_semantics=semantics,
            vmem_limit_bytes=vmem_limit),
        cost_estimate=cost,
    )(*flats)

    out_shape = list(shape0)
    out_shape[d] = c_total
    return out_flat.reshape(out_shape)


if __name__ == "__main__":
    key = jax.random.PRNGKey(0)
    k1, k2, k3, k4, k5, k6, k7, k8, k9 = jax.random.split(key, 9)

    # --- test 1: YOLO-style channel concat on NCHW feature maps (small outer
    #     -> column-tiled plan with a 2-step inner grid) ---
    B, H, W = 2, 16, 16
    xs = [
        jax.random.normal(k1, (B, 4, H, W), jnp.float32),
        jax.random.normal(k2, (B, 6, H, W), jnp.float32),
        jax.random.normal(k3, (B, 2, H, W), jnp.float32),
    ]
    out = jax.block_until_ready(concat_forward(xs, dimension=1))
    ref = jnp.concatenate(xs, axis=1)
    assert out.shape == ref.shape
    if not jnp.array_equal(out, ref):
        raise AssertionError("Pallas concat mismatch (test 1)")

    # --- test 2: larger batch, lane-aligned widths (row plan, single step) ---
    ys = [
        jax.random.normal(k4, (16, 3, 8, 16), jnp.float32),
        jax.random.normal(k5, (16, 5, 8, 16), jnp.float32),
    ]
    out2 = jax.block_until_ready(concat_forward(ys, dimension=1))
    ref2 = jnp.concatenate(ys, axis=1)
    if not jnp.array_equal(out2, ref2):
        raise AssertionError("Pallas concat mismatch (test 2)")

    # --- test 3: last-dim concat with non-divisible row count
    #     (row-tiled plan, cdiv ragged tail) ---
    zs = [
        jax.random.normal(k6, (2, 12, 100, 128), jnp.float32),
        jax.random.normal(k7, (2, 12, 100, 128), jnp.float32),
    ]
    out3 = jax.block_until_ready(concat_forward(zs, dimension=3))
    ref3 = jnp.concatenate(zs, axis=3)
    if not jnp.array_equal(out3, ref3):
        raise AssertionError("Pallas concat mismatch (test 3)")

    # --- test 4: mixed dtypes (cast fused into the kernel copy) ---
    ws = [
        jax.random.normal(k8, (2, 4, 8, 128), jnp.float32),
        jax.random.normal(k9, (2, 6, 8, 128), jnp.bfloat16),
    ]
    out4 = jax.block_until_ready(concat_forward(ws, dimension=1))
    ref4 = jnp.concatenate(ws, axis=1)
    assert out4.dtype == ref4.dtype
    if not jnp.array_equal(out4, ref4):
        raise AssertionError("Pallas concat mismatch (test 4)")

    print("KERNEL_OK")
</pallas_src>

<mosaic_0001>
module attributes {stable_mosaic.version = 11 : i64} {
  func.func @kernel(%arg0: i32, %arg1: i32, %arg2: memref<2x4x128xf32, #tpu.memory_space<vmem>>, %arg3: memref<2x6x128xf32, #tpu.memory_space<vmem>>, %arg4: memref<2x2x128xf32, #tpu.memory_space<vmem>>, %arg5: memref<2x12x128xf32, #tpu.memory_space<vmem>>) attributes {dimension_semantics = [#tpu.dimension_semantics<parallel>, #tpu.dimension_semantics<parallel>], iteration_bounds = array<i64: 1, 2>, scalar_prefetch = 0 : i64, scratch_operands = 0 : i64, tpu.core_type = #tpu.core_type<tc>, window_params = [{transform_indices = @transform_0, window_bounds = array<i64: 2, 4, 128>}, {transform_indices = @transform_1, window_bounds = array<i64: 2, 6, 128>}, {transform_indices = @transform_2, window_bounds = array<i64: 2, 2, 128>}, {transform_indices = @transform_3, window_bounds = array<i64: 2, 12, 128>}]} {
    %c0 = arith.constant 0 : index
    %c0_0 = arith.constant 0 : index
    %c0_1 = arith.constant 0 : index
    %0 = vector.load %arg2[%c0, %c0_0, %c0_1] : memref<2x4x128xf32, #tpu.memory_space<vmem>>, vector<2x4x128xf32>
    %c0_2 = arith.constant 0 : index
    %c0_3 = arith.constant 0 : index
    %c0_4 = arith.constant 0 : index
    %1 = vector.load %arg5[%c0_2, %c0_3, %c0_4] : memref<2x12x128xf32, #tpu.memory_space<vmem>>, vector<2x4x128xf32>
    tpu.vector_store %arg5[%c0_2, %c0_3, %c0_4], %0 {strides = array<i32>} : memref<2x12x128xf32, #tpu.memory_space<vmem>>, vector<2x4x128xf32>,
    %c0_5 = arith.constant 0 : index
    %c0_6 = arith.constant 0 : index
    %c0_7 = arith.constant 0 : index
    %2 = vector.load %arg3[%c0_5, %c0_6, %c0_7] : memref<2x6x128xf32, #tpu.memory_space<vmem>>, vector<2x6x128xf32>
    %c0_8 = arith.constant 0 : index
    %c4 = arith.constant 4 : index
    %c0_9 = arith.constant 0 : index
    %3 = vector.load %arg5[%c0_8, %c4, %c0_9] : memref<2x12x128xf32, #tpu.memory_space<vmem>>, vector<2x6x128xf32>
    tpu.vector_store %arg5[%c0_8, %c4, %c0_9], %2 {strides = array<i32>} : memref<2x12x128xf32, #tpu.memory_space<vmem>>, vector<2x6x128xf32>,
    %c0_10 = arith.constant 0 : index
    %c0_11 = arith.constant 0 : index
    %c0_12 = arith.constant 0 : index
    %4 = vector.load %arg4[%c0_10, %c0_11, %c0_12] : memref<2x2x128xf32, #tpu.memory_space<vmem>>, vector<2x2x128xf32>
    %c0_13 = arith.constant 0 : index
    %c10 = arith.constant 10 : index
    %c0_14 = arith.constant 0 : index
    %5 = vector.load %arg5[%c0_13, %c10, %c0_14] : memref<2x12x128xf32, #tpu.memory_space<vmem>>, vector<2x2x128xf32>
    tpu.vector_store %arg5[%c0_13, %c10, %c0_14], %4 {strides = array<i32>} : memref<2x12x128xf32, #tpu.memory_space<vmem>>, vector<2x2x128xf32>,
    return
  }
  func.func @transform_0(%arg0: i32, %arg1: i32) -> (i32, i32, i32) {
    %c0_i32 = arith.constant 0 : i32
    %c0_i32_0 = arith.constant 0 : i32
    return %arg0, %c0_i32, %arg1 : i32, i32, i32
  }
  func.func @transform_1(%arg0: i32, %arg1: i32) -> (i32, i32, i32) {
    %c0_i32 = arith.constant 0 : i32
    %c0_i32_0 = arith.constant 0 : i32
    return %arg0, %c0_i32, %arg1 : i32, i32, i32
  }
  func.func @transform_2(%arg0: i32, %arg1: i32) -> (i32, i32, i32) {
    %c0_i32 = arith.constant 0 : i32
    %c0_i32_0 = arith.constant 0 : i32
    return %arg0, %c0_i32, %arg1 : i32, i32, i32
  }
  func.func @transform_3(%arg0: i32, %arg1: i32) -> (i32, i32, i32) {
    %c0_i32 = arith.constant 0 : i32
    %c0_i32_0 = arith.constant 0 : i32
    return %arg0, %c0_i32, %arg1 : i32, i32, i32
  }
}

</mosaic_0001>

<llo_original>
// kernel: tpu_custom_call.1
$region0: #{tpu_custom_call.1}
  #allocation0 [shape = 'u32[]', space=smem, size = 0x4, offset = 0x4, fixed_abs, tag = 'smem constant byte address 0x4 - core index']
  #allocation1 [shape = 'u32[72,128]{1,0:T(1,128)}', space=vmem, size = 0x9000, scoped, tag = 'internal scratch']
  %s0 = inlined_call_operand.vmem [shape: f32[2,4,256], index: 0, kind: input, shape index: {}]
  %s1 = inlined_call_operand.vmem [shape: f32[2,6,256], index: 1, kind: input, shape index: {}]
  %s2 = inlined_call_operand.vmem [shape: f32[2,2,256], index: 2, kind: input, shape index: {}]
  %s3 = inlined_call_operand.vmem [shape: f32[2,12,256], index: 3, kind: output, shape index: {}]
  %s4 = sld [smem:[#allocation0]]
  $region192: #{tpu_custom_call.1} parent=0
    _
  %s6 = ssub.s32 1, %s4
  %s7 = scalar_select 0, %s6, %s4
  $region1: #{tpu_custom_call.1} parent=0
    #allocation2 [shape = 'u8[8192]{0}', space=vmem, size = 0x2000, scoped, tag = 'input window, operand 0']
    #allocation3 [shape = 'u8[16384]{0}', space=vmem, size = 0x4000, scoped, tag = 'input window, operand 1']
    #allocation4 [shape = 'u8[4096]{0}', space=vmem, size = 0x1000, scoped, tag = 'input window, operand 2']
    #allocation5 [shape = 'u8[32768]{0}', space=vmem, size = 0x8000, scoped, tag = 'output window, operand 0']
    loop: start=0, step=1, limit=4
    $region2: #{tpu_custom_call.1} parent=1 // loop_pre_header
      _
    $region3: #{tpu_custom_call.1} parent=1 // loop_header
      %s9 = sphi 0, %s13
      %p10 = scmp.ge.s32.totalorder %s9, 4
      %s16 = sphi 0, %s28
      %s17 = sphi 0, %s24
      %s18 = sphi 0, %s16
      %s19 = sphi 0, %s17
      %s20 = sphi 0, %s18
      %s21 = sphi 0, %s19
      %s33 = sphi 0, %s35
      %s36 = sphi 0, %s33
      %s37 = sphi 0, %s36
      %s53 = sphi 0, %s37
      %s61 = sphi 0, %s63
      %s64 = sphi 0, %s61
      %s65 = sphi 0, %s64
      %s81 = sphi 0, %s65
      %s89 = sphi 0, %s91
      %s92 = sphi 0, %s89
      %s93 = sphi 0, %s92
      %s109 = sphi 0, %s93
      %s117 = sphi 0, %s119
      %s120 = sphi 0, %s117
      %s121 = sphi 0, %s120
      %s137 = sphi 0, %s121
    $region4: #{tpu_custom_call.1} parent=1 // loop_header_branch
      %12 = sbr.rel (%p10) target = $region8
    $region5: #{tpu_custom_call.1} parent=1 // loop_body
      %s14 = ssub.s32 %s9, 1
      %s15 = ssub.s32 %s9, 2
      %s22 = sadd.s32 1, %s17
      %p23 = scmp.ge.s32.totalorder %s22, 2
      %s24 = scalar_select %p23, 0, %s22
      %s25 = sadd.s32 1, %s16
      %s26 = scalar_select %p23, %s25, %s16
      %p27 = scmp.ge.s32.totalorder %s26, 1
      %s28 = scalar_select %p27, 0, %s26
      %s29 = ssub.s32 %s16, %s28
      %s30 = ssub.s32 %s17, %s24
      %s31 = sor.u32 %s29, %s30
      %p32 = scmp.eq.s32.totalorder %s31, 0
      %s34 = sadd.s32 %s33, 1
      %s35 = scalar_select %p32, %s33, %s34
      %p38 = pneg %p32
      %p39 = scmp.eq.s32.totalorder %s9, 1
      %p40 = por %p38, %p39
      %p41 = scmp.ne.s32.totalorder %s33, %s36
      %p42 = scmp.eq.s32.totalorder %s9, 0
      %p43 = por %p41, %p42
      %p44 = scmp.ne.s32.totalorder %s33, %s36
      %p45 = scmp.eq.s32.totalorder %s14, 1
      %p46 = por %p44, %p45
      %p47 = scmp.ne.s32.totalorder %s36, %s37
      %p48 = scmp.eq.s32.totalorder %s14, 0
      %p49 = por %p47, %p48
      %p50 = scmp.ne.s32.totalorder %s36, %s37
      %p51 = scmp.eq.s32.totalorder %s15, 1
      %p52 = por %p50, %p51
      %p54 = scmp.ne.s32.totalorder %s37, %s53
      %p55 = scmp.eq.s32.totalorder %s15, 0
      %p56 = por %p54, %p55
      %s57 = ssub.s32 %s16, %s28
      %s58 = ssub.s32 %s17, %s24
      %s59 = sor.u32 %s57, %s58
      %p60 = scmp.eq.s32.totalorder %s59, 0
      %s62 = sadd.s32 %s61, 1
      %s63 = scalar_select %p60, %s61, %s62
      %p66 = pneg %p60
      %p67 = scmp.eq.s32.totalorder %s9, 1
      %p68 = por %p66, %p67
      %p69 = scmp.ne.s32.totalorder %s61, %s64
      %p70 = scmp.eq.s32.totalorder %s9, 0
      %p71 = por %p69, %p70
      %p72 = scmp.ne.s32.totalorder %s61, %s64
      %p73 = scmp.eq.s32.totalorder %s14, 1
      %p74 = por %p72, %p73
      %p75 = scmp.ne.s32.totalorder %s64, %s65
      %p76 = scmp.eq.s32.totalorder %s14, 0
      %p77 = por %p75, %p76
      %p78 = scmp.ne.s32.totalorder %s64, %s65
      %p79 = scmp.eq.s32.totalorder %s15, 1
      %p80 = por %p78, %p79
      %p82 = scmp.ne.s32.totalorder %s65, %s81
      %p83 = scmp.eq.s32.totalorder %s15, 0
      %p84 = por %p82, %p83
      %s85 = ssub.s32 %s16, %s28
      %s86 = ssub.s32 %s17, %s24
      %s87 = sor.u32 %s85, %s86
      %p88 = scmp.eq.s32.totalorder %s87, 0
      %s90 = sadd.s32 %s89, 1
      %s91 = scalar_select %p88, %s89, %s90
      %p94 = pneg %p88
      %p95 = scmp.eq.s32.totalorder %s9, 1
      %p96 = por %p94, %p95
      %p97 = scmp.ne.s32.totalorder %s89, %s92
      %p98 = scmp.eq.s32.totalorder %s9, 0
      %p99 = por %p97, %p98
      %p100 = scmp.ne.s32.totalorder %s89, %s92
      %p101 = scmp.eq.s32.totalorder %s14, 1
      %p102 = por %p100, %p101
      %p103 = scmp.ne.s32.totalorder %s92, %s93
      %p104 = scmp.eq.s32.totalorder %s14, 0
      %p105 = por %p103, %p104
      %p106 = scmp.ne.s32.totalorder %s92, %s93
      %p107 = scmp.eq.s32.totalorder %s15, 1
      %p108 = por %p106, %p107
      %p110 = scmp.ne.s32.totalorder %s93, %s109
      %p111 = scmp.eq.s32.totalorder %s15, 0
      %p112 = por %p110, %p111
      %s113 = ssub.s32 %s16, %s28
      %s114 = ssub.s32 %s17, %s24
      %s115 = sor.u32 %s113, %s114
      %p116 = scmp.eq.s32.totalorder %s115, 0
      %s118 = sadd.s32 %s117, 1
      %s119 = scalar_select %p116, %s117, %s118
      %p122 = pneg %p116
      %p123 = scmp.eq.s32.totalorder %s9, 1
      %p124 = por %p122, %p123
      %p125 = scmp.ne.s32.totalorder %s117, %s120
      %p126 = scmp.eq.s32.totalorder %s9, 0
      %p127 = por %p125, %p126
      %p128 = scmp.ne.s32.totalorder %s117, %s120
      %p129 = scmp.eq.s32.totalorder %s14, 1
      %p130 = por %p128, %p129
      %p131 = scmp.ne.s32.totalorder %s120, %s121
      %p132 = scmp.eq.s32.totalorder %s14, 0
      %p133 = por %p131, %p132
      %p134 = scmp.ne.s32.totalorder %s120, %s121
      %p135 = scmp.eq.s32.totalorder %s15, 1
      %p136 = por %p134, %p135
      %p138 = scmp.ne.s32.totalorder %s121, %s137
      %p139 = scmp.eq.s32.totalorder %s15, 0
      %p140 = por %p138, %p139
      %p141 = scmp.le.s32.totalorder 1, %s9
      %p142 = scmp.lt.s32.totalorder %s9, 3
      %p143 = pnand %p141, %p142
      %p144 = pneg %p143
      // Predicated region
      $region9: #{tpu_custom_call.1} parent=5 // pred_check
        _
      $region10: #{tpu_custom_call.1} parent=5 // pred_check_branch
        %146 = sbr.rel (%p143) target = $region12
      $region11: #{tpu_custom_call.1} parent=5 // pred_region
        %s147 = ssub.s32 %s9, 1
      $region12: #{tpu_custom_call.1} parent=5 // pred_fallthru
        _
      %p148 = scmp.lt.s32.totalorder %s9, 2
      // Predicated region
      $region13: #{tpu_custom_call.1} parent=5 // pred_check
        %p149 = pneg %p148
      $region14: #{tpu_custom_call.1} parent=5 // pred_check_branch
        %151 = sbr.rel (%p149) target = $region16
      $region15: #{tpu_custom_call.1} parent=5 // pred_region
        // Predicated region
        $region17: #{tpu_custom_call.1} parent=15 // pred_check
          %p152 = pneg %p43
        $region18: #{tpu_custom_call.1} parent=15 // pred_check_branch
          %154 = sbr.rel (%p152) target = $region20
        $region19: #{tpu_custom_call.1} parent=15 // pred_region
          %s155 = sand.u32 %s33, 1
          %s156 = sand.u32 %s33, 1
          %s157 = smul.addr %s156, 8
          %s158 = scalar_lea.vmem [#allocation2], %s157
          %s159 = smul.u32 2, %s16
          %s160 = smul.addr %s159, 2
          %s161 = sadd.s32 %s17, %s160
          %s162 = smul.addr %s161, 4
          %s163 = scalar_lea.vmem %s0, %s162
          // Predicated region
          $region21: #{tpu_custom_call.1} parent=19 // pred_check
            _
          $region22: #{tpu_custom_call.1} parent=19 // pred_check_branch
            %165 = sbr.rel (0) target = $region24
          $region23: #{tpu_custom_call.1} parent=19 // pred_region
            // Predicated region
            $region25: #{tpu_custom_call.1} parent=23 // pred_check
              _
            $region26: #{tpu_custom_call.1} parent=23 // pred_check_branch
              %167 = sbr.rel target = $region28
            $region27: #{tpu_custom_call.1} parent=23 // pred_region
              // Predicated region
              $region40: #{tpu_custom_call.1} parent=27 // pred_check
                _
              $region41: #{tpu_custom_call.1} parent=27 // pred_check_branch
                %185 = sbr.rel (0) target = $region43
              $region42: #{tpu_custom_call.1} parent=27 // pred_region
                loop: start=0, step=1, limit=1
                $region44: #{tpu_custom_call.1} parent=42 // loop_pre_header
                  _
                $region45: #{tpu_custom_call.1} parent=42 // loop_header
                  %s187 = sphi 0, %s191
                  %p188 = scmp.ge.s32.totalorder %s187, 1
                  %s192 = sphi %s163, %s163
                  %s193 = sphi %s158, %s158
                $region46: #{tpu_custom_call.1} parent=42 // loop_header_branch
                  %190 = sbr.rel (%p188) target = $region50
                $region47: #{tpu_custom_call.1} parent=42 // loop_body
                  _
                $region48: #{tpu_custom_call.1} parent=42 // loop_footer
                  %s191 = sadd.s32 1, %s187
                $region49: #{tpu_custom_call.1} parent=42 // loop_footer_branch
                  %186 = sbr.rel target = $region45
                $region50: #{tpu_custom_call.1} parent=42 // loop_exit
                  _
                %s195 = ssub.s32 16, 1
                loop: start=0, step=1, limit=1
                $region51: #{tpu_custom_call.1} parent=42 // loop_pre_header
                  _
                $region52: #{tpu_custom_call.1} parent=42 // loop_header
                  %s197 = sphi 0, %s201
                  %p198 = scmp.ge.s32.totalorder %s197, 1
                  %s202 = sphi %s163, %s163
                  %s203 = sphi %s158, %s158
                $region53: #{tpu_custom_call.1} parent=42 // loop_header_branch
                  %200 = sbr.rel (%p198) target = $region57
                $region54: #{tpu_custom_call.1} parent=42 // loop_body
                  %v204 = vld [vmem:[%s202] sm:%s195]
                  %205 = vst [vmem:[%s203] sm:%s195] %v204
                  %v206 = vld [vmem:[%s202 + $0x8] sm:%s195]
                  %207 = vst [vmem:[%s203 + $0x4] sm:%s195] %v206
                $region55: #{tpu_custom_call.1} parent=42 // loop_footer
                  %s201 = sadd.s32 1, %s197
                $region56: #{tpu_custom_call.1} parent=42 // loop_footer_branch
                  %196 = sbr.rel target = $region52
                $region57: #{tpu_custom_call.1} parent=42 // loop_exit
                  _
              $region43: #{tpu_custom_call.1} parent=27 // pred_fallthru
                _
            $region28: #{tpu_custom_call.1} parent=23 // pred_fallthru
              _
            // Predicated region
            $region29: #{tpu_custom_call.1} parent=23 // pred_check
              _
            $region30: #{tpu_custom_call.1} parent=23 // pred_check_branch
              %169 = sbr.rel (0) target = $region32
            $region31: #{tpu_custom_call.1} parent=23 // pred_region
              %s171 = ssub.s32 16, 1
              loop: start=0, step=1, limit=1
              $region33: #{tpu_custom_call.1} parent=31 // loop_pre_header
                _
              $region34: #{tpu_custom_call.1} parent=31 // loop_header
                %s173 = sphi 0, %s177
                %p174 = scmp.ge.s32.totalorder %s173, 1
                %s178 = sphi %s163, %s163
                %s179 = sphi %s158, %s158
              $region35: #{tpu_custom_call.1} parent=31 // loop_header_branch
                %176 = sbr.rel (%p174) target = $region39
              $region36: #{tpu_custom_call.1} parent=31 // loop_body
                %v180 = vld [vmem:[%s178] sm:%s171]
                %181 = vst [vmem:[%s179] sm:%s171] %v180
                %v182 = vld [vmem:[%s178 + $0x8] sm:%s171]
                %183 = vst [vmem:[%s179 + $0x4] sm:%s171] %v182
              $region37: #{tpu_custom_call.1} parent=31 // loop_footer
                %s177 = sadd.s32 1, %s173
              $region38: #{tpu_custom_call.1} parent=31 // loop_footer_branch
                %172 = sbr.rel target = $region34
              $region39: #{tpu_custom_call.1} parent=31 // loop_exit
                _
            $region32: #{tpu_custom_call.1} parent=23 // pred_fallthru
              _
          $region24: #{tpu_custom_call.1} parent=19 // pred_fallthru
            _
          %208 = vnop
        $region20: #{tpu_custom_call.1} parent=15 // pred_fallthru
          _
        // Predicated region
        $region58: #{tpu_custom_call.1} parent=15 // pred_check
          %p209 = pneg %p71
        $region59: #{tpu_custom_call.1} parent=15 // pred_check_branch
          %211 = sbr.rel (%p209) target = $region61
        $region60: #{tpu_custom_call.1} parent=15 // pred_region
          %s212 = sand.u32 %s61, 1
          %s213 = sand.u32 %s61, 1
          %s214 = smul.addr %s213, 16
          %s215 = scalar_lea.vmem [#allocation3], %s214
          %s216 = smul.u32 2, %s16
          %s217 = smul.addr %s216, 2
          %s218 = sadd.s32 %s17, %s217
          %s219 = smul.addr %s218, 8
          %s220 = scalar_lea.vmem %s1, %s219
          // Predicated region
          $region62: #{tpu_custom_call.1} parent=60 // pred_check
            _
          $region63: #{tpu_custom_call.1} parent=60 // pred_check_branch
            %222 = sbr.rel (0) target = $region65
          $region64: #{tpu_custom_call.1} parent=60 // pred_region
            // Predicated region
            $region66: #{tpu_custom_call.1} parent=64 // pred_check
              _
            $region67: #{tpu_custom_call.1} parent=64 // pred_check_branch
              %224 = sbr.rel (0) target = $region69
            $region68: #{tpu_custom_call.1} parent=64 // pred_region
              // Predicated region
              $region81: #{tpu_custom_call.1} parent=68 // pred_check
                _
              $region82: #{tpu_custom_call.1} parent=68 // pred_check_branch
                %242 = sbr.rel (0) target = $region84
              $region83: #{tpu_custom_call.1} parent=68 // pred_region
                loop: start=0, step=1, limit=1
                $region85: #{tpu_custom_call.1} parent=83 // loop_pre_header
                  _
                $region86: #{tpu_custom_call.1} parent=83 // loop_header
                  %s244 = sphi 0, %s248
                  %p245 = scmp.ge.s32.totalorder %s244, 1
                  %s249 = sphi %s220, %s220
                  %s250 = sphi %s215, %s215
                $region87: #{tpu_custom_call.1} parent=83 // loop_header_branch
                  %247 = sbr.rel (%p245) target = $region91
                $region88: #{tpu_custom_call.1} parent=83 // loop_body
                  %v251 = vld [vmem:[%s249] sm:$0xff]
                  %252 = vst [vmem:[%s250] sm:$0xff] %v251
                  %v253 = vld [vmem:[%s249 + $0x10] sm:$0xff]
                  %254 = vst [vmem:[%s250 + $0x8] sm:$0xff] %v253
                $region89: #{tpu_custom_call.1} parent=83 // loop_footer
                  %s248 = sadd.s32 1, %s244
                $region90: #{tpu_custom_call.1} parent=83 // loop_footer_branch
                  %243 = sbr.rel target = $region86
                $region91: #{tpu_custom_call.1} parent=83 // loop_exit
                  _
              $region84: #{tpu_custom_call.1} parent=68 // pred_fallthru
                _
              // Predicated region
              $region92: #{tpu_custom_call.1} parent=68 // pred_check
                _
              $region93: #{tpu_custom_call.1} parent=68 // pred_check_branch
                %256 = sbr.rel target = $region95
              $region94: #{tpu_custom_call.1} parent=68 // pred_region
                _
              $region95: #{tpu_custom_call.1} parent=68 // pred_fallthru
                _
            $region69: #{tpu_custom_call.1} parent=64 // pred_fallthru
              _
            // Predicated region
            $region70: #{tpu_custom_call.1} parent=64 // pred_check
              _
            $region71: #{tpu_custom_call.1} parent=64 // pred_check_branch
              %226 = sbr.rel target = $region73
            $region72: #{tpu_custom_call.1} parent=64 // pred_region
              %s228 = ssub.s32 256, 1
              loop: start=0, step=1, limit=1
              $region74: #{tpu_custom_call.1} parent=72 // loop_pre_header
                _
              $region75: #{tpu_custom_call.1} parent=72 // loop_header
                %s230 = sphi 0, %s234
                %p231 = scmp.ge.s32.totalorder %s230, 1
                %s235 = sphi %s220, %s220
                %s236 = sphi %s215, %s215
              $region76: #{tpu_custom_call.1} parent=72 // loop_header_branch
                %233 = sbr.rel (%p231) target = $region80
              $region77: #{tpu_custom_call.1} parent=72 // loop_body
                %v237 = vld [vmem:[%s235] sm:%s228]
                %238 = vst [vmem:[%s236] sm:%s228] %v237
                %v239 = vld [vmem:[%s235 + $0x10] sm:%s228]
                %240 = vst [vmem:[%s236 + $0x8] sm:%s228] %v239
              $region78: #{tpu_custom_call.1} parent=72 // loop_footer
                %s234 = sadd.s32 1, %s230
              $region79: #{tpu_custom_call.1} parent=72 // loop_footer_branch
                %229 = sbr.rel target = $region75
              $region80: #{tpu_custom_call.1} parent=72 // loop_exit
                _
            $region73: #{tpu_custom_call.1} parent=64 // pred_fallthru
              _
          $region65: #{tpu_custom_call.1} parent=60 // pred_fallthru
            _
          %257 = vnop
        $region61: #{tpu_custom_call.1} parent=15 // pred_fallthru
          _
        // Predicated region
        $region96: #{tpu_custom_call.1} parent=15 // pred_check
          %p258 = pneg %p99
        $region97: #{tpu_custom_call.1} parent=15 // pred_check_branch
          %260 = sbr.rel (%p258) target = $region99
        $region98: #{tpu_custom_call.1} parent=15 // pred_region
          %s261 = sand.u32 %s89, 1
          %s262 = sand.u32 %s89, 1
          %s263 = smul.addr %s262, 4
          %s264 = scalar_lea.vmem [#allocation4], %s263
          %s265 = smul.u32 2, %s16
          %s266 = smul.addr %s265, 2
          %s267 = sadd.s32 %s17, %s266
          %s268 = smul.addr %s267, 2
          %s269 = scalar_lea.vmem %s2, %s268
          // Predicated region
          $region100: #{tpu_custom_call.1} parent=98 // pred_check
            _
          $region101: #{tpu_custom_call.1} parent=98 // pred_check_branch
            %271 = sbr.rel (0) target = $region103
          $region102: #{tpu_custom_call.1} parent=98 // pred_region
            // Predicated region
            $region104: #{tpu_custom_call.1} parent=102 // pred_check
              _
            $region105: #{tpu_custom_call.1} parent=102 // pred_check_branch
              %273 = sbr.rel target = $region107
            $region106: #{tpu_custom_call.1} parent=102 // pred_region
              // Predicated region
              $region119: #{tpu_custom_call.1} parent=106 // pred_check
                _
              $region120: #{tpu_custom_call.1} parent=106 // pred_check_branch
                %291 = sbr.rel (0) target = $region122
              $region121: #{tpu_custom_call.1} parent=106 // pred_region
                %s293 = ssub.s32 4, 1
                loop: start=0, step=1, limit=1
                $region123: #{tpu_custom_call.1} parent=121 // loop_pre_header
                  _
                $region124: #{tpu_custom_call.1} parent=121 // loop_header
                  %s295 = sphi 0, %s299
                  %p296 = scmp.ge.s32.totalorder %s295, 1
                  %s300 = sphi %s269, %s269
                  %s301 = sphi %s264, %s264
                $region125: #{tpu_custom_call.1} parent=121 // loop_header_branch
                  %298 = sbr.rel (%p296) target = $region129
                $region126: #{tpu_custom_call.1} parent=121 // loop_body
                  %v302 = vld [vmem:[%s300] sm:%s293]
                  %303 = vst [vmem:[%s301] sm:%s293] %v302
                  %v304 = vld [vmem:[%s300 + $0x4] sm:%s293]
                  %305 = vst [vmem:[%s301 + $0x2] sm:%s293] %v304
                $region127: #{tpu_custom_call.1} parent=121 // loop_footer
                  %s299 = sadd.s32 1, %s295
                $region128: #{tpu_custom_call.1} parent=121 // loop_footer_branch
                  %294 = sbr.rel target = $region124
                $region129: #{tpu_custom_call.1} parent=121 // loop_exit
                  _
              $region122: #{tpu_custom_call.1} parent=106 // pred_fallthru
                _
            $region107: #{tpu_custom_call.1} parent=102 // pred_fallthru
              _
            // Predicated region
            $region108: #{tpu_custom_call.1} parent=102 // pred_check
              _
            $region109: #{tpu_custom_call.1} parent=102 // pred_check_branch
              %275 = sbr.rel (0) target = $region111
            $region110: #{tpu_custom_call.1} parent=102 // pred_region
              %s277 = ssub.s32 4, 1
              loop: start=0, step=1, limit=1
              $region112: #{tpu_custom_call.1} parent=110 // loop_pre_header
                _
              $region113: #{tpu_custom_call.1} parent=110 // loop_header
                %s279 = sphi 0, %s283
                %p280 = scmp.ge.s32.totalorder %s279, 1
                %s284 = sphi %s269, %s269
                %s285 = sphi %s264, %s264
              $region114: #{tpu_custom_call.1} parent=110 // loop_header_branch
                %282 = sbr.rel (%p280) target = $region118
              $region115: #{tpu_custom_call.1} parent=110 // loop_body
                %v286 = vld [vmem:[%s284] sm:%s277]
                %287 = vst [vmem:[%s285] sm:%s277] %v286
                %v288 = vld [vmem:[%s284 + $0x4] sm:%s277]
                %289 = vst [vmem:[%s285 + $0x2] sm:%s277] %v288
              $region116: #{tpu_custom_call.1} parent=110 // loop_footer
                %s283 = sadd.s32 1, %s279
              $region117: #{tpu_custom_call.1} parent=110 // loop_footer_branch
                %278 = sbr.rel target = $region113
              $region118: #{tpu_custom_call.1} parent=110 // loop_exit
                _
            $region111: #{tpu_custom_call.1} parent=102 // pred_fallthru
              _
          $region103: #{tpu_custom_call.1} parent=98 // pred_fallthru
            _
          %306 = vnop
        $region99: #{tpu_custom_call.1} parent=15 // pred_fallthru
          _
      $region16: #{tpu_custom_call.1} parent=5 // pred_fallthru
        _
      %p307 = scmp.le.s32.totalorder 1, %s9
      %p308 = scmp.lt.s32.totalorder %s9, 3
      %p309 = pnand %p307, %p308
      %p310 = pneg %p309
      // Predicated region
      $region130: #{tpu_custom_call.1} parent=5 // pred_check
        _
      $region131: #{tpu_custom_call.1} parent=5 // pred_check_branch
        %312 = sbr.rel (%p309) target = $region133
      $region132: #{tpu_custom_call.1} parent=5 // pred_region
        %s313 = ssub.s32 %s9, 1
        %s314 = sand.u32 %s36, 1
        %s315 = sand.u32 %s36, 1
        %s316 = smul.addr %s315, 8
        %s317 = scalar_lea.vmem [#allocation2], %s316
        // Predicated region
        $region134: #{tpu_custom_call.1} parent=132 // pred_check
          %p318 = pneg %p49
        $region135: #{tpu_custom_call.1} parent=132 // pred_check_branch
          %320 = sbr.rel (%p318) target = $region137
        $region136: #{tpu_custom_call.1} parent=132 // pred_region
          _
        $region137: #{tpu_custom_call.1} parent=132 // pred_fallthru
          _
        %s321 = sand.u32 %s64, 1
        %s322 = sand.u32 %s64, 1
        %s323 = smul.addr %s322, 16
        %s324 = scalar_lea.vmem [#allocation3], %s323
        // Predicated region
        $region138: #{tpu_custom_call.1} parent=132 // pred_check
          %p325 = pneg %p77
        $region139: #{tpu_custom_call.1} parent=132 // pred_check_branch
          %327 = sbr.rel (%p325) target = $region141
        $region140: #{tpu_custom_call.1} parent=132 // pred_region
          _
        $region141: #{tpu_custom_call.1} parent=132 // pred_fallthru
          _
        %s328 = sand.u32 %s92, 1
        %s329 = sand.u32 %s92, 1
        %s330 = smul.addr %s329, 4
        %s331 = scalar_lea.vmem [#allocation4], %s330
        // Predicated region
        $region142: #{tpu_custom_call.1} parent=132 // pred_check
          %p332 = pneg %p105
        $region143: #{tpu_custom_call.1} parent=132 // pred_check_branch
          %334 = sbr.rel (%p332) target = $region145
        $region144: #{tpu_custom_call.1} parent=132 // pred_region
          _
        $region145: #{tpu_custom_call.1} parent=132 // pred_fallthru
          _
        %s335 = sand.u32 %s36, 1
        %s336 = sand.u32 %s36, 1
        %s337 = smul.addr %s336, 8
        %s338 = scalar_lea.vmem [#allocation2], %s337
        %p339 = pneg %p49
        %p340 = pneg %p46
        %s341 = sand.u32 %s64, 1
        %s342 = sand.u32 %s64, 1
        %s343 = smul.addr %s342, 16
        %s344 = scalar_lea.vmem [#allocation3], %s343
        %p345 = pneg %p77
        %p346 = pneg %p74
        %s347 = sand.u32 %s92, 1
        %s348 = sand.u32 %s92, 1
        %s349 = smul.addr %s348, 4
        %s350 = scalar_lea.vmem [#allocation4], %s349
        %p351 = pneg %p105
        %p352 = pneg %p102
        %p353 = pneg %p133
        %p354 = pneg %p130
        %s355 = sand.u32 %s120, 1
        %s356 = sand.u32 %s120, 1
        %s357 = smul.addr %s356, 32
        %s358 = scalar_lea.vmem [#allocation5], %s357
        %s359 = smul.u32 2, %s18
        %s360 = smul.u32 2, %s18
        %s361 = smul.u32 2, %s18
        %s362 = smul.u32 2, %s18
        %v363 = vld [vmem:[%s317] sm:$0xf]
        %v364 = vld [vmem:[%s317 + $0x4] sm:$0xf]
        %365 = vst [vmem:[%s358] sm:$0xf] %v363
        %366 = vst [vmem:[%s358 + $0x10] sm:$0xf] %v364
        %v367 = vld [vmem:[%s324] sm:$0x3f]
        %v368 = vld [vmem:[%s324 + $0x8] sm:$0x3f]
        %369 = vst [vmem:[%s358 + $0x4] sm:$0x3f] %v367
        %370 = vst [vmem:[%s358 + $0x14] sm:$0x3f] %v368
        %v371 = vld [vmem:[%s331] sm:$0x3]
        %v372 = vld [vmem:[%s331 + $0x2] sm:$0x3]
        %373 = vst [vmem:[%s358 + $0xa] sm:$0x3] %v371
        %374 = vst [vmem:[%s358 + $0x1a] sm:$0x3] %v372
        %s375 = sand.u32 %s120, 1
        %s376 = sand.u32 %s120, 1
        %s377 = smul.addr %s376, 32
        %s378 = scalar_lea.vmem [#allocation5], %s377
        // Predicated region
        $region146: #{tpu_custom_call.1} parent=132 // pred_check
          %p379 = pneg %p130
        $region147: #{tpu_custom_call.1} parent=132 // pred_check_branch
          %381 = sbr.rel (%p379) target = $region149
        $region148: #{tpu_custom_call.1} parent=132 // pred_region
          %s382 = smul.u32 2, %s18
          %s383 = smul.addr %s382, 4
          %s384 = sadd.s32 %s19, %s383
          %s385 = smul.addr %s384, 8
          %s386 = scalar_lea.vmem %s3, %s385
          // Predicated region
          $region150: #{tpu_custom_call.1} parent=148 // pred_check
            _
          $region151: #{tpu_custom_call.1} parent=148 // pred_check_branch
            %388 = sbr.rel (0) target = $region153
          $region152: #{tpu_custom_call.1} parent=148 // pred_region
            // Predicated region
            $region154: #{tpu_custom_call.1} parent=152 // pred_check
              _
            $region155: #{tpu_custom_call.1} parent=152 // pred_check_branch
              %390 = sbr.rel (0) target = $region157
            $region156: #{tpu_custom_call.1} parent=152 // pred_region
              // Predicated region
              $region169: #{tpu_custom_call.1} parent=156 // pred_check
                _
              $region170: #{tpu_custom_call.1} parent=156 // pred_check_branch
                %412 = sbr.rel (0) target = $region172
              $region171: #{tpu_custom_call.1} parent=156 // pred_region
                loop: start=0, step=1, limit=1
                $region173: #{tpu_custom_call.1} parent=171 // loop_pre_header
                  _
                $region174: #{tpu_custom_call.1} parent=171 // loop_header
                  %s414 = sphi 0, %s418
                  %p415 = scmp.ge.s32.totalorder %s414, 1
                  %s419 = sphi %s378, %s378
                  %s420 = sphi %s386, %s386
                $region175: #{tpu_custom_call.1} parent=171 // loop_header_branch
                  %417 = sbr.rel (%p415) target = $region179
                $region176: #{tpu_custom_call.1} parent=171 // loop_body
                  %v421 = vld [vmem:[%s419] sm:$0xff]
                  %422 = vst [vmem:[%s420] sm:$0xff] %v421
                  %v423 = vld [vmem:[%s419 + $0x8] sm:$0xff]
                  %424 = vst [vmem:[%s420 + $0x10] sm:$0xff] %v423
                  %v425 = vld [vmem:[%s419 + $0x10] sm:$0xff]
                  %426 = vst [vmem:[%s420 + $0x20] sm:$0xff] %v425
                  %v427 = vld [vmem:[%s419 + $0x18] sm:$0xff]
                  %428 = vst [vmem:[%s420 + $0x30] sm:$0xff] %v427
                $region177: #{tpu_custom_call.1} parent=171 // loop_footer
                  %s418 = sadd.s32 1, %s414
                $region178: #{tpu_custom_call.1} parent=171 // loop_footer_branch
                  %413 = sbr.rel target = $region174
                $region179: #{tpu_custom_call.1} parent=171 // loop_exit
                  _
              $region172: #{tpu_custom_call.1} parent=156 // pred_fallthru
                _
              // Predicated region
              $region180: #{tpu_custom_call.1} parent=156 // pred_check
                _
              $region181: #{tpu_custom_call.1} parent=156 // pred_check_branch
                %430 = sbr.rel target = $region183
              $region182: #{tpu_custom_call.1} parent=156 // pred_region
                _
              $region183: #{tpu_custom_call.1} parent=156 // pred_fallthru
                _
            $region157: #{tpu_custom_call.1} parent=152 // pred_fallthru
              _
            // Predicated region
            $region158: #{tpu_custom_call.1} parent=152 // pred_check
              _
            $region159: #{tpu_custom_call.1} parent=152 // pred_check_branch
              %392 = sbr.rel target = $region161
            $region160: #{tpu_custom_call.1} parent=152 // pred_region
              %s394 = ssub.s32 256, 1
              loop: start=0, step=1, limit=1
              $region162: #{tpu_custom_call.1} parent=160 // loop_pre_header
                _
              $region163: #{tpu_custom_call.1} parent=160 // loop_header
                %s396 = sphi 0, %s400
                %p397 = scmp.ge.s32.totalorder %s396, 1
                %s401 = sphi %s378, %s378
                %s402 = sphi %s386, %s386
              $region164: #{tpu_custom_call.1} parent=160 // loop_header_branch
                %399 = sbr.rel (%p397) target = $region168
              $region165: #{tpu_custom_call.1} parent=160 // loop_body
                %v403 = vld [vmem:[%s401] sm:%s394]
                %404 = vst [vmem:[%s402] sm:%s394] %v403
                %v405 = vld [vmem:[%s401 + $0x8] sm:%s394]
                %406 = vst [vmem:[%s402 + $0x10] sm:%s394] %v405
                %v407 = vld [vmem:[%s401 + $0x10] sm:%s394]
                %408 = vst [vmem:[%s402 + $0x20] sm:%s394] %v407
                %v409 = vld [vmem:[%s401 + $0x18] sm:%s394]
                %410 = vst [vmem:[%s402 + $0x30] sm:%s394] %v409
              $region166: #{tpu_custom_call.1} parent=160 // loop_footer
                %s400 = sadd.s32 1, %s396
              $region167: #{tpu_custom_call.1} parent=160 // loop_footer_branch
                %395 = sbr.rel target = $region163
              $region168: #{tpu_custom_call.1} parent=160 // loop_exit
                _
            $region161: #{tpu_custom_call.1} parent=152 // pred_fallthru
              _
          $region153: #{tpu_custom_call.1} parent=148 // pred_fallthru
            _
          %431 = vnop
        $region149: #{tpu_custom_call.1} parent=132 // pred_fallthru
          _
      $region133: #{tpu_custom_call.1} parent=5 // pred_fallthru
        _
      %p432 = scmp.le.s32.totalorder 2, %s9
      // Predicated region
      $region184: #{tpu_custom_call.1} parent=5 // pred_check
        %p433 = pneg %p432
      $region185: #{tpu_custom_call.1} parent=5 // pred_check_branch
        %435 = sbr.rel (%p433) target = $region187
      $region186: #{tpu_custom_call.1} parent=5 // pred_region
        %s436 = ssub.s32 %s9, 2
        // Predicated region
        $region188: #{tpu_custom_call.1} parent=186 // pred_check
          %p437 = pneg %p136
        $region189: #{tpu_custom_call.1} parent=186 // pred_check_branch
          %439 = sbr.rel (%p437) target = $region191
        $region190: #{tpu_custom_call.1} parent=186 // pred_region
          %s440 = sand.u32 %s121, 1
          %s441 = sand.u32 %s121, 1
          %s442 = smul.addr %s441, 32
          %s443 = scalar_lea.vmem [#allocation5], %s442
        $region191: #{tpu_custom_call.1} parent=186 // pred_fallthru
          _
      $region187: #{tpu_custom_call.1} parent=5 // pred_fallthru
        _
    $region6: #{tpu_custom_call.1} parent=1 // loop_footer
      %s13 = sadd.s32 1, %s9
    $region7: #{tpu_custom_call.1} parent=1 // loop_footer_branch
      %8 = sbr.rel target = $region3
    $region8: #{tpu_custom_call.1} parent=1 // loop_exit
      _

</llo_original>
